<compile_context>
chip_gen: v7x
topology: tpu7x:2x2x1
jax: 0.10.0
libtpu: 0.0.40
codegen_flags: <defaults>
</compile_context>

<pallas_src>
import numpy as np
import jax
import jax.numpy as jnp
from jax.experimental import pallas as pl
from jax.experimental.pallas import tpu as pltpu


_TARGET_BLOCK_BYTES = 4 * 1024 * 1024   # ~4 MiB/block: past the HBM-roofline knee
_VMEM_LIMIT_BYTES = 32 << 20            # 4 x 4 MiB double-buffered in/out fits everywhere


def _identity_kernel(x_ref, o_ref):
    # Pure pass-through of the current VMEM tile.
    o_ref[...] = x_ref[...]


def _sublane_multiple(dtype) -> int:
    itemsize = jnp.dtype(dtype).itemsize
    if itemsize >= 4:
        return 8
    if itemsize == 2:
        return 16
    return 32


def _choose_view(shape, dtype):
    """Pick a lane-dense 2-D (rows, cols) view of a contiguous tensor."""
    total = 1
    for d in shape:
        total *= int(d)
    # Prefer a wide, 128-multiple lane dimension (unmasked full-lane stores).
    for cols in (8192, 4096, 2048, 1024, 512, 256, 128):
        if total % cols == 0:
            return total // cols, cols
    # Fallback: keep the original last dim (full-array-dim exemption on lanes).
    cols = int(shape[-1]) if len(shape) >= 1 else 1
    cols = max(cols, 1)
    return total // cols, cols


def _choose_tile_rows(rows, cols, dtype):
    """Byte-based block sizing, dtype-aware sublane multiple, >=2 grid steps
    when the row count permits (helps v7x's two TensorCores)."""
    itemsize = jnp.dtype(dtype).itemsize
    sub = _sublane_multiple(dtype)
    row_bytes = max(1, cols * itemsize)

    tile = _TARGET_BLOCK_BYTES // row_bytes
    tile = (tile // sub) * sub
    tile = max(tile, sub)

    if tile >= rows:
        if rows >= 2 * sub:
            # Split into >=2 blocks (block rows a multiple of `sub`); the
            # trailing partial block is handled by the cdiv grid.
            half = (((rows + 1) // 2) + sub - 1) // sub * sub
            tile = min(half, rows)
        else:
            # Single block covering the full array (full-dim exemption).
            tile = rows
    return tile


def _identity_pallas_2d(x2d):
    rows, cols = x2d.shape
    tile_rows = _choose_tile_rows(rows, cols, x2d.dtype)
    grid = (pl.cdiv(rows, tile_rows),)

    return pl.pallas_call(
        _identity_kernel,
        out_shape=jax.ShapeDtypeStruct((rows, cols), x2d.dtype),
        grid_spec=pltpu.PrefetchScalarGridSpec(
            num_scalar_prefetch=0,
            grid=grid,
            in_specs=[pl.BlockSpec((tile_rows, cols), lambda i: (i, 0))],
            out_specs=pl.BlockSpec((tile_rows, cols), lambda i: (i, 0)),
        ),
        # Output aliases the input buffer: no fresh HBM allocation for a pure
        # pass-through (combined with donate_argnums at the jit boundary).
        input_output_aliases={0: 0},
        compiler_params=pltpu.CompilerParams(
            dimension_semantics=("parallel",),
            vmem_limit_bytes=_VMEM_LIMIT_BYTES,
        ),
    )(x2d)


def tez_forward(x: jax.Array) -> jax.Array:
    """Pass-through 'forward' of tez.Model, executed as a Pallas TPU kernel."""
    orig_shape = x.shape
    rows, cols = _choose_view(orig_shape, x.dtype)
    x2d = x.reshape(rows, cols)
    out2d = _identity_pallas_2d(x2d)
    return out2d.reshape(orig_shape)


# Donate the input at the jit boundary so the input/output aliasing inside the
# pallas_call can actually reuse the caller's HBM buffer.
tez_forward_jit = jax.jit(tez_forward, donate_argnums=(0,))


if __name__ == "__main__":
    # tez.Model.__init__ declares no parameters — only the input tensor.
    key = jax.random.PRNGKey(0)
    # Small NCHW input consistent with a typical vision forward(): B=2, C=4, 16x16.
    x = jax.random.normal(key, (2, 4, 16, 16), dtype=jnp.float32)

    # Keep a host copy for verification, since x is donated to the kernel.
    x_host = np.asarray(jax.device_get(x))

    y = tez_forward_jit(x)
    y = jax.block_until_ready(y)

    # Correctness check: forward is an exact pass-through.
    y_host = np.asarray(jax.device_get(y))
    assert y_host.shape == x_host.shape and y_host.dtype == x_host.dtype
    assert np.array_equal(y_host, x_host)

    print("KERNEL_OK")
</pallas_src>

<mosaic_0001>
module attributes {stable_mosaic.version = 11 : i64} {
  func.func @_identity_kernel(%arg0: i32, %arg1: memref<1x2048xf32, #tpu.memory_space<vmem>>, %arg2: memref<1x2048xf32, #tpu.memory_space<vmem>>) attributes {dimension_semantics = [#tpu.dimension_semantics<parallel>], iteration_bounds = array<i64: 1>, scalar_prefetch = 0 : i64, scratch_operands = 0 : i64, tpu.core_type = #tpu.core_type<tc>, window_params = [{transform_indices = @transform_0, window_bounds = array<i64: 1, 2048>}, {transform_indices = @transform_1, window_bounds = array<i64: 1, 2048>}]} {
    %c0 = arith.constant 0 : index
    %c0_0 = arith.constant 0 : index
    %0 = vector.load %arg1[%c0, %c0_0] : memref<1x2048xf32, #tpu.memory_space<vmem>>, vector<1x2048xf32>
    %c0_1 = arith.constant 0 : index
    %c0_2 = arith.constant 0 : index
    %1 = vector.load %arg2[%c0_1, %c0_2] : memref<1x2048xf32, #tpu.memory_space<vmem>>, vector<1x2048xf32>
    tpu.vector_store %arg2[%c0_1, %c0_2], %0 {strides = array<i32>} : memref<1x2048xf32, #tpu.memory_space<vmem>>, vector<1x2048xf32>,
    return
  }
  func.func @transform_0(%arg0: i32) -> (i32, i32) {
    %c0_i32 = arith.constant 0 : i32
    %c0_i32_0 = arith.constant 0 : i32
    return %arg0, %c0_i32 : i32, i32
  }
  func.func @transform_1(%arg0: i32) -> (i32, i32) {
    %c0_i32 = arith.constant 0 : i32
    %c0_i32_0 = arith.constant 0 : i32
    return %arg0, %c0_i32 : i32, i32
  }
}

</mosaic_0001>

<llo_original>
// kernel: tez_forward.1
$region0: #{tez_forward.1}
  #allocation0 [shape = 'u32[]', space=smem, size = 0x4, offset = 0x4, fixed_abs, tag = 'smem constant byte address 0x4 - core index']
  #allocation1 [shape = 'u32[144,128]{1,0:T(1,128)}', space=vmem, size = 0x12000, scoped, tag = 'internal scratch']
  %s0 = inlined_call_operand.vmem [shape: f32[1,2048], index: 0, kind: input, shape index: {}, may-alias: {0,1}]
  %s1 = inlined_call_operand.vmem [shape: f32[1,2048], index: 1, kind: output, shape index: {}, may-alias: {0,1}]
  %s2 = sld [smem:[#allocation0]]
  $region14: #{tez_forward.1} parent=0
    _
  %s4 = ssub.s32 1, %s2
  %s5 = scalar_select 0, %s4, %s2
  // Predicated region
  $region2: #{tez_forward.1} parent=0 // pred_check
    _
  $region3: #{tez_forward.1} parent=0 // pred_check_branch
    %7 = sbr.rel (0) target = $region5
  $region4: #{tez_forward.1} parent=0 // pred_region
    _
  $region5: #{tez_forward.1} parent=0 // pred_fallthru
    _
  %v8 = vld [vmem:[%s0] sm:$0xff]
  %v9 = vld [vmem:[%s0 + $0x8] sm:$0xff]
  %10 = vst [vmem:[%s1] sm:$0xff] %v8
  %11 = vst [vmem:[%s1 + $0x8] sm:$0xff] %v9
  // Predicated region
  $region6: #{tez_forward.1} parent=0 // pred_check
    _
  $region7: #{tez_forward.1} parent=0 // pred_check_branch
    %13 = sbr.rel (0) target = $region9
  $region8: #{tez_forward.1} parent=0 // pred_region
    _
  $region9: #{tez_forward.1} parent=0 // pred_fallthru
    _
  // Predicated region
  $region10: #{tez_forward.1} parent=0 // pred_check
    _
  $region11: #{tez_forward.1} parent=0 // pred_check_branch
    %15 = sbr.rel (0) target = $region13
  $region12: #{tez_forward.1} parent=0 // pred_region
    _
  $region13: #{tez_forward.1} parent=0 // pred_fallthru
    _

</llo_original>
